<compile_context>
chip_gen: v5e
topology: v5e:2x2
jax: 0.10.0
libtpu: 0.0.40
codegen_flags: <defaults>
</compile_context>

<pallas_src>
import jax
import jax.numpy as jnp
from jax.experimental import pallas as pl
from jax.experimental.pallas import tpu as pltpu

HIDDEN = 14
OUTPUTS = 2


def pack_params(w1, b1, w2, b2):
    """Pack the MLP parameters once (at load time) into one (8,128)-aligned block.

    w1: [H, H] (PyTorch [out, in]), b1: [H], w2: [OUT, H], b2: [OUT]
    Returns [16, 128] f32:
      rows 0..H-1, cols 0..H-1        -> w1^T  (kernel computes x @ W)
      row  H,      cols 0..H-1        -> b1
      rows 0..H-1, cols H..H+OUT-1    -> w2^T
      row  H,      cols H..H+OUT-1    -> b2
    """
    packed = jnp.zeros((16, 128), dtype=jnp.float32)
    packed = packed.at[:HIDDEN, :HIDDEN].set(w1.T.astype(jnp.float32))
    packed = packed.at[HIDDEN, :HIDDEN].set(b1.astype(jnp.float32))
    packed = packed.at[:HIDDEN, HIDDEN:HIDDEN + OUTPUTS].set(w2.T.astype(jnp.float32))
    packed = packed.at[HIDDEN, HIDDEN:HIDDEN + OUTPUTS].set(b2.astype(jnp.float32))
    return packed


def global_block_kernel(x_ref, seg_ref, params_ref, out_ref):
    # x_ref:   [KB*N, H]  all nodes of the KB instances in this chunk
    # seg_ref: [1, KB*N]  segment id per node, already offset by k*G per instance
    # params_ref: [16, 128] packed MLP parameters
    # out_ref: [KB*G, OUT]
    x = x_ref[...].astype(jnp.float32)
    seg = seg_ref[...]                                   # int32
    params = params_ref[...]

    nt = x.shape[0]          # KB*N
    gt = out_ref.shape[0]    # KB*G

    # Block-diagonal segment matrix for ALL KB instances at once:
    # row (k*G + g) selects nodes of instance k assigned to graph g.
    row_ids = jax.lax.broadcasted_iota(jnp.int32, (gt, nt), 0)
    onehot = (row_ids == seg).astype(jnp.float32)        # [GT, NT]

    counts = jnp.sum(onehot, axis=1, keepdims=True)      # [GT, 1]  (XLU reduce)
    sums = jnp.dot(onehot, x, preferred_element_type=jnp.float32)   # [GT, H] (MXU)
    inv = pl.reciprocal(jnp.maximum(counts, 1.0), approx=False)     # EUP slot
    mean = sums * inv                                     # empty segments -> 0

    # Static, aligned sub-views of the packed parameter block (no extra DMAs).
    w1 = params[:HIDDEN, :HIDDEN]                         # [H, H]
    b1 = params[HIDDEN:HIDDEN + 1, :HIDDEN]               # [1, H]
    w2 = params[:HIDDEN, HIDDEN:HIDDEN + OUTPUTS]         # [H, OUT]
    b2 = params[HIDDEN:HIDDEN + 1, HIDDEN:HIDDEN + OUTPUTS]

    # global_mlp: Lin(H, H) -> ReLU -> Lin(H, OUT), applied to KB*G rows at once.
    h = jnp.dot(mean, w1, preferred_element_type=jnp.float32) + b1
    h = jnp.maximum(h, 0.0)
    y = jnp.dot(h, w2, preferred_element_type=jnp.float32) + b2     # [GT, OUT]
    out_ref[...] = y.astype(out_ref.dtype)


def _choose_instances_per_step(num_instances, nodes_per_instance, num_graphs):
    """Pick KB: fill ~one MXU contraction tile, keep the one-hot small (v7x VMEM)."""
    kb = max(1, 256 // max(nodes_per_instance, 1))   # KB*N ~ 256
    kb = min(kb, max(num_instances, 1))
    if 8 <= kb < num_instances:
        kb = (kb // 8) * 8                            # KB (and KB*G) sublane-aligned
    # Cap the quadratic block-diagonal one-hot (KB*G x KB*N f32) to a few MiB so it
    # never threatens v7x's 64 MiB physical VMEM or starts spilling vregs.
    while kb > 1 and (kb * num_graphs) * (kb * nodes_per_instance) * 4 > (4 << 20):
        kb = max(1, kb // 2)
    return kb


def global_block_batched(x, batch, num_graphs, params, *, instances_per_step=None):
    """x: [K, N, H] f32, batch: [K, N] int, params: packed [16, 128].
    Returns [K, num_graphs, OUTPUTS] f32. KB instances are folded into each grid step."""
    K, N, H = x.shape
    assert H == HIDDEN
    G = int(num_graphs)

    KB = instances_per_step or _choose_instances_per_step(K, N, G)
    KB = max(1, min(KB, K))
    num_chunks = -(-K // KB)
    K_pad = num_chunks * KB

    GT = KB * G      # rows of the block-diagonal segment matrix per chunk
    NT = KB * N      # columns (nodes) per chunk

    x_p = x.astype(jnp.float32)
    b_p = batch.astype(jnp.int32)
    if K_pad != K:
        x_p = jnp.pad(x_p, ((0, K_pad - K), (0, 0), (0, 0)))
        # Sentinel >= GT so padded rows never match any block-diagonal segment row.
        b_p = jnp.pad(b_p, ((0, K_pad - K), (0, 0)), constant_values=GT)

    # Fold the per-instance graph offset (k*G, k = index within chunk) into the
    # segment ids in plain JAX (cheap, fused by XLA, done once per call).
    offs = (jnp.arange(K_pad, dtype=jnp.int32) % KB) * G
    seg = (b_p + offs[:, None]).reshape(num_chunks, 1, NT)
    x_r = x_p.reshape(num_chunks, NT, HIDDEN)

    flops_per_chunk = (2 * GT * NT * HIDDEN            # block-diag segment-sum matmul
                       + 2 * GT * HIDDEN * HIDDEN      # Lin(H, H)
                       + 2 * GT * HIDDEN * OUTPUTS)    # Lin(H, OUT)
    bytes_accessed = (x_r.size * 4 + seg.size * 4 + params.size * 4
                      + num_chunks * GT * OUTPUTS * 4)

    out = pl.pallas_call(
        global_block_kernel,
        out_shape=jax.ShapeDtypeStruct((num_chunks, GT, OUTPUTS), jnp.float32),
        grid=(num_chunks,),
        in_specs=[
            pl.BlockSpec((None, NT, HIDDEN), lambda c: (c, 0, 0)),   # x chunk
            pl.BlockSpec((None, 1, NT), lambda c: (c, 0, 0)),        # segment ids
            pl.BlockSpec((16, 128), lambda c: (0, 0)),               # params (grid-invariant)
        ],
        out_specs=pl.BlockSpec((None, GT, OUTPUTS), lambda c: (c, 0, 0)),
        # "parallel": with >=2 chunks, v7x's two TensorCores each take one;
        # on v5e/v6e the chooser already minimizes the number of steps.
        compiler_params=pltpu.CompilerParams(dimension_semantics=("parallel",)),
        cost_estimate=pl.CostEstimate(
            flops=num_chunks * flops_per_chunk,
            transcendentals=0,
            bytes_accessed=bytes_accessed,
        ),
    )(x_r, seg, params)

    return out.reshape(K_pad, G, OUTPUTS)[:K]


def global_block(x, batch, num_graphs, params):
    """Single-instance forward matching the PyTorch module: x [N, H], batch [N]."""
    return global_block_batched(x[None], batch[None], num_graphs, params)[0]


def reference(x, batch, num_graphs, w1, b1, w2, b2):
    # plain-JAX reference for the same semantics (high precision for comparison)
    hi = jax.lax.Precision.HIGHEST
    onehot = (jnp.arange(num_graphs)[:, None] == batch[None, :]).astype(jnp.float32)
    counts = jnp.maximum(onehot.sum(axis=1, keepdims=True), 1.0)
    mean = jnp.dot(onehot, x, precision=hi) / counts
    h = jnp.maximum(jnp.dot(mean, w1.T, precision=hi) + b1, 0.0)
    return jnp.dot(h, w2.T, precision=hi) + b2


if __name__ == "__main__":
    key = jax.random.PRNGKey(0)
    k_w1, k_b1, k_w2, k_b2, k_x1, k_xK, k_bK, k_x3, k_b3 = jax.random.split(key, 9)

    # Deterministic parameter init (Linear: W [out, in], b [out]).
    w1 = jax.random.normal(k_w1, (HIDDEN, HIDDEN), dtype=jnp.float32) * 0.1
    b1 = jax.random.normal(k_b1, (HIDDEN,), dtype=jnp.float32) * 0.1
    w2 = jax.random.normal(k_w2, (OUTPUTS, HIDDEN), dtype=jnp.float32) * 0.1
    b2 = jax.random.normal(k_b2, (OUTPUTS,), dtype=jnp.float32) * 0.1
    params = pack_params(w1, b1, w2, b2)  # packed + padded + transposed ONCE at load time

    # --- A: single instance (matches the PyTorch forward signature) ---
    N, num_graphs = 8, 2
    x1 = jax.random.normal(k_x1, (N, HIDDEN), dtype=jnp.float32)
    batch1 = jnp.array([0, 0, 0, 1, 1, 1, 1, 0], dtype=jnp.int32)
    out1 = jax.block_until_ready(global_block(x1, batch1, num_graphs, params))
    ref1 = reference(x1, batch1, num_graphs, w1, b1, w2, b2)
    assert out1.shape == (num_graphs, OUTPUTS)
    assert jnp.allclose(out1, ref1, atol=1e-5, rtol=1e-5)

    # --- B: K=64 instances collapsed into 2 grid steps (KB=32, KB*N=256) ---
    K = 64
    xK = jax.random.normal(k_xK, (K, N, HIDDEN), dtype=jnp.float32)
    batchK = jax.random.randint(k_bK, (K, N), 0, num_graphs).astype(jnp.int32)
    outK = jax.block_until_ready(global_block_batched(xK, batchK, num_graphs, params))
    refK = jax.vmap(lambda xx, bb: reference(xx, bb, num_graphs, w1, b1, w2, b2))(xK, batchK)
    assert outK.shape == (K, num_graphs, OUTPUTS)
    assert jnp.allclose(outK, refK, atol=1e-5, rtol=1e-5)

    # --- C: odd shapes + padding path (K=5 not divisible by KB=2, G=3, N=7) ---
    K3, N3, G3 = 5, 7, 3
    x3 = jax.random.normal(k_x3, (K3, N3, HIDDEN), dtype=jnp.float32)
    batch3 = jax.random.randint(k_b3, (K3, N3), 0, G3).astype(jnp.int32)
    out3 = jax.block_until_ready(
        global_block_batched(x3, batch3, G3, params, instances_per_step=2))
    ref3 = jax.vmap(lambda xx, bb: reference(xx, bb, G3, w1, b1, w2, b2))(x3, batch3)
    assert out3.shape == (K3, G3, OUTPUTS)
    assert jnp.allclose(out3, ref3, atol=1e-5, rtol=1e-5)

    print("KERNEL_OK")
</pallas_src>

<mosaic_0001>
module attributes {stable_mosaic.version = 11 : i64} {
  func.func @global_block_kernel(%arg0: i32, %arg1: memref<1x8x14xf32, #tpu.memory_space<vmem>>, %arg2: memref<1x1x8xi32, #tpu.memory_space<vmem>>, %arg3: memref<16x128xf32, #tpu.memory_space<vmem>>, %arg4: memref<1x2x2xf32, #tpu.memory_space<vmem>>) attributes {dimension_semantics = [#tpu.dimension_semantics<parallel>], iteration_bounds = array<i64: 1>, scalar_prefetch = 0 : i64, scratch_operands = 0 : i64, tpu.core_type = #tpu.core_type<tc>, window_params = [{transform_indices = @transform_0, window_bounds = array<i64: 1, 8, 14>}, {transform_indices = @transform_1, window_bounds = array<i64: 1, 1, 8>}, {pipeline_mode = #tpu.pipeline_mode<synchronous>, transform_indices = @transform_2, window_bounds = array<i64: 16, 128>}, {transform_indices = @transform_3, window_bounds = array<i64: 1, 2, 2>}]} {
    %c0 = arith.constant 0 : index
    %c0_0 = arith.constant 0 : index
    %c0_1 = arith.constant 0 : index
    %0 = vector.load %arg1[%c0, %c0_0, %c0_1] : memref<1x8x14xf32, #tpu.memory_space<vmem>>, vector<1x8x14xf32>
    %1 = vector.shape_cast %0 : vector<1x8x14xf32> to vector<8x14xf32>
    %c0_2 = arith.constant 0 : index
    %c0_3 = arith.constant 0 : index
    %c0_4 = arith.constant 0 : index
    %2 = vector.load %arg2[%c0_2, %c0_3, %c0_4] : memref<1x1x8xi32, #tpu.memory_space<vmem>>, vector<1x1x8xi32>
    %3 = vector.shape_cast %2 : vector<1x1x8xi32> to vector<1x8xi32>
    %c0_5 = arith.constant 0 : index
    %c0_6 = arith.constant 0 : index
    %4 = vector.load %arg3[%c0_5, %c0_6] : memref<16x128xf32, #tpu.memory_space<vmem>>, vector<16x128xf32>
    %5 = tpu.iota {dimensions = array<i32: 0>} : vector<2x8xi32>
    %6 = vector.broadcast %3 : vector<1x8xi32> to vector<2x8xi32>
    %7 = arith.cmpi eq, %5, %6 : vector<2x8xi32>
    %8 = arith.extui %7 : vector<2x8xi1> to vector<2x8xi32>
    %9 = arith.sitofp %8 : vector<2x8xi32> to vector<2x8xf32>
    %cst = arith.constant dense<0.000000e+00> : vector<2xf32>
    %10 = vector.multi_reduction <add>, %9, %cst [1] : vector<2x8xf32> to vector<2xf32>
    %11 = vector.shape_cast %10 : vector<2xf32> to vector<2x1xf32>
    %cst_7 = arith.constant dense<0.000000e+00> : vector<2x14xf32>
    %12 = tpu.matmul %9, %1, %cst_7 {dimension_numbers = #tpu.dot_dimension_numbers<[1], [0], [0], [1], [0, 0, 1, 1], [], []>} : vector<2x8xf32>, vector<8x14xf32>, vector<2x14xf32> -> vector<2x14xf32>
    %cst_8 = arith.constant 1.000000e+00 : f32
    %13 = vector.broadcast %cst_8 : f32 to vector<2x1xf32>
    %14 = arith.maximumf %11, %13 : vector<2x1xf32>
    %15 = tpu.reciprocal %14 : vector<2x1xf32> -> vector<2x1xf32>
    %16 = vector.broadcast %15 : vector<2x1xf32> to vector<2x14xf32>
    %17 = arith.mulf %12, %16 : vector<2x14xf32>
    %18 = vector.extract_strided_slice %4 {offsets = [0, 0], sizes = [14, 14], strides = [1, 1]} : vector<16x128xf32> to vector<14x14xf32>
    %19 = vector.extract_strided_slice %4 {offsets = [14, 0], sizes = [1, 14], strides = [1, 1]} : vector<16x128xf32> to vector<1x14xf32>
    %20 = vector.extract_strided_slice %4 {offsets = [0, 14], sizes = [14, 2], strides = [1, 1]} : vector<16x128xf32> to vector<14x2xf32>
    %21 = vector.extract_strided_slice %4 {offsets = [14, 14], sizes = [1, 2], strides = [1, 1]} : vector<16x128xf32> to vector<1x2xf32>
    %cst_9 = arith.constant dense<0.000000e+00> : vector<2x14xf32>
    %22 = tpu.matmul %17, %18, %cst_9 {dimension_numbers = #tpu.dot_dimension_numbers<[1], [0], [0], [1], [0, 0, 1, 1], [], []>} : vector<2x14xf32>, vector<14x14xf32>, vector<2x14xf32> -> vector<2x14xf32>
    %23 = vector.broadcast %19 : vector<1x14xf32> to vector<2x14xf32>
    %24 = arith.addf %22, %23 : vector<2x14xf32>
    %cst_10 = arith.constant 0.000000e+00 : f32
    %25 = vector.broadcast %cst_10 : f32 to vector<2x14xf32>
    %26 = arith.maximumf %24, %25 : vector<2x14xf32>
    %cst_11 = arith.constant dense<0.000000e+00> : vector<2x2xf32>
    %27 = tpu.matmul %26, %20, %cst_11 {dimension_numbers = #tpu.dot_dimension_numbers<[1], [0], [0], [1], [0, 0, 1, 1], [], []>} : vector<2x14xf32>, vector<14x2xf32>, vector<2x2xf32> -> vector<2x2xf32>
    %28 = vector.broadcast %21 : vector<1x2xf32> to vector<2x2xf32>
    %29 = arith.addf %27, %28 : vector<2x2xf32>
    %c0_12 = arith.constant 0 : index
    %c0_13 = arith.constant 0 : index
    %c0_14 = arith.constant 0 : index
    %30 = vector.load %arg4[%c0_12, %c0_13, %c0_14] : memref<1x2x2xf32, #tpu.memory_space<vmem>>, vector<1x2x2xf32>
    %31 = vector.shape_cast %30 : vector<1x2x2xf32> to vector<2x2xf32>
    %32 = vector.shape_cast %29 : vector<2x2xf32> to vector<1x2x2xf32>
    tpu.vector_store %arg4[%c0_12, %c0_13, %c0_14], %32 {strides = array<i32>} : memref<1x2x2xf32, #tpu.memory_space<vmem>>, vector<1x2x2xf32>,
    return
  }
  func.func @transform_0(%arg0: i32) -> (i32, i32, i32) {
    %c0_i32 = arith.constant 0 : i32
    %c0_i32_0 = arith.constant 0 : i32
    %c0_i32_1 = arith.constant 0 : i32
    return %arg0, %c0_i32, %c0_i32_0 : i32, i32, i32
  }
  func.func @transform_1(%arg0: i32) -> (i32, i32, i32) {
    %c0_i32 = arith.constant 0 : i32
    %c0_i32_0 = arith.constant 0 : i32
    %c0_i32_1 = arith.constant 0 : i32
    return %arg0, %c0_i32, %c0_i32_0 : i32, i32, i32
  }
  func.func @transform_2(%arg0: i32) -> (i32, i32) {
    %c0_i32 = arith.constant 0 : i32
    %c0_i32_0 = arith.constant 0 : i32
    %c0_i32_1 = arith.constant 0 : i32
    return %c0_i32, %c0_i32_0 : i32, i32
  }
  func.func @transform_3(%arg0: i32) -> (i32, i32, i32) {
    %c0_i32 = arith.constant 0 : i32
    %c0_i32_0 = arith.constant 0 : i32
    %c0_i32_1 = arith.constant 0 : i32
    return %arg0, %c0_i32, %c0_i32_0 : i32, i32, i32
  }
}

</mosaic_0001>

<llo_original>
// kernel: tpu_custom_call.1
$region0: #{tpu_custom_call.1}
  #allocation0 [shape = 'u32[]', space=smem, size = 0x4, offset = 0x4, fixed_abs, tag = 'smem constant byte address 0x4 - core index']
  #allocation1 [shape = 'u32[72,128]{1,0:T(1,128)}', space=vmem, size = 0x9000, scoped, tag = 'internal scratch']
  %s0 = inlined_call_operand.hbm [shape: f32[1,8,14], index: 0, kind: input, shape index: {}]
  %s1 = inlined_call_operand.hbm [shape: s32[1,1,8], index: 1, kind: input, shape index: {}]
  %s2 = inlined_call_operand.hbm [shape: f32[16,128], index: 2, kind: input, shape index: {}]
  %s3 = inlined_call_operand.hbm [shape: f32[1,2,2], index: 3, kind: output, shape index: {}]
  %s4 = sld [smem:[#allocation0]]
  $region34: #{tpu_custom_call.1} parent=0
    _
  %s6 = ssub.s32 1, %s4
  %s7 = scalar_select 0, %s6, %s4
  $region1: #{tpu_custom_call.1} parent=0
    #allocation2 [shape = 'u8[4096]{0}', space=vmem, size = 0x1000, scoped, tag = 'input window, operand 0, single buffered']
    #allocation3 [shape = 's32[1]{0}', space=sflag, size = 0x4, scoped, tag = 'scoped memory for tpu_custom_call.1']
    #allocation4 [shape = 's32[1]{0}', space=sflag, size = 0x4, scoped, tag = 'scoped memory for tpu_custom_call.1']
    #allocation5 [shape = 'u8[512]{0}', space=vmem, size = 0x400, scoped, tag = 'input window, operand 1, single buffered']
    #allocation6 [shape = 's32[1]{0}', space=sflag, size = 0x4, scoped, tag = 'scoped memory for tpu_custom_call.1']
    #allocation7 [shape = 'u8[8192]{0}', space=vmem, size = 0x2000, scoped, tag = 'input window, operand 2, single buffered']
    #allocation8 [shape = 'u8[1024]{0}', space=vmem, size = 0x400, scoped, tag = 'output window, operand 0, single buffered']
    %8 = vsyncpa [#allocation3], 0
    %9 = vsyncpa [#allocation6], 0
    %10 = vsyncpa [#allocation4], 0
    // Predicated region
    $region2: #{tpu_custom_call.1} parent=1 // pred_check
      _
    $region3: #{tpu_custom_call.1} parent=1 // pred_check_branch
      %12 = sbr.rel (0) target = $region5
    $region4: #{tpu_custom_call.1} parent=1 // pred_region
      %14 = vsyncadd [#allocation3], 0
      %s16 = sshll.u32 %s0, 4
      %s17 = int_to_ptr.hbm [resolvable:$true] %s16
      %s18 = sshll.u32 [#allocation2], 4
      %s19 = int_to_ptr.vmem [resolvable:$true] %s18
      %21 = dma.hbm_to_vmem [thread:$0]  %s17, 128, %s19, [#allocation3]
    $region5: #{tpu_custom_call.1} parent=1 // pred_fallthru
      _
    // Predicated region
    $region6: #{tpu_custom_call.1} parent=1 // pred_check
      _
    $region7: #{tpu_custom_call.1} parent=1 // pred_check_branch
      %23 = sbr.rel (0) target = $region9
    $region8: #{tpu_custom_call.1} parent=1 // pred_region
      %25 = vsyncadd [#allocation6], 0
      %s27 = sshll.u32 %s1, 4
      %s28 = int_to_ptr.hbm [resolvable:$true] %s27
      %s29 = sshll.u32 [#allocation5], 4
      %s30 = int_to_ptr.vmem [resolvable:$true] %s29
      %32 = dma.hbm_to_vmem [thread:$0]  %s28, 16, %s30, [#allocation6]
    $region9: #{tpu_custom_call.1} parent=1 // pred_fallthru
      _
    // Predicated region
    $region10: #{tpu_custom_call.1} parent=1 // pred_check
      _
    $region11: #{tpu_custom_call.1} parent=1 // pred_check_branch
      %34 = sbr.rel (0) target = $region13
    $region12: #{tpu_custom_call.1} parent=1 // pred_region
      %36 = vsyncadd [#allocation6], 0
      %s37 = sshll.u32 %s2, 4
      %s38 = int_to_ptr.hbm [resolvable:$true] %s37
      %s39 = sshll.u32 [#allocation7], 4
      %s40 = int_to_ptr.vmem [resolvable:$true] %s39
      %45 = dma.hbm_to_vmem [thread:$0]  %s38, 256, %s40, [#allocation6], 128, 128, 8
    $region13: #{tpu_custom_call.1} parent=1 // pred_fallthru
      _
    // Predicated region
    $region14: #{tpu_custom_call.1} parent=1 // pred_check
      _
    $region15: #{tpu_custom_call.1} parent=1 // pred_check_branch
      %47 = sbr.rel (0) target = $region17
    $region16: #{tpu_custom_call.1} parent=1 // pred_region
      %49 = dma.done [#allocation3], 128
    $region17: #{tpu_custom_call.1} parent=1 // pred_fallthru
      _
    // Predicated region
    $region18: #{tpu_custom_call.1} parent=1 // pred_check
      _
    $region19: #{tpu_custom_call.1} parent=1 // pred_check_branch
      %51 = sbr.rel (0) target = $region21
    $region20: #{tpu_custom_call.1} parent=1 // pred_region
      %53 = dma.done [#allocation6], 16
    $region21: #{tpu_custom_call.1} parent=1 // pred_fallthru
      _
    // Predicated region
    $region22: #{tpu_custom_call.1} parent=1 // pred_check
      _
    $region23: #{tpu_custom_call.1} parent=1 // pred_check_branch
      %55 = sbr.rel (0) target = $region25
    $region24: #{tpu_custom_call.1} parent=1 // pred_region
      %57 = dma.done [#allocation6], 256
    $region25: #{tpu_custom_call.1} parent=1 // pred_fallthru
      _
    %v58 = vld [vmem:[#allocation2] sm:$0xff]
    %v59 = vld [vmem:[#allocation5] sm:$0x1]
    %v60 = vld [vmem:[#allocation7] sm:$0xff]
    %v61 = vld [vmem:[#allocation7 + $0x8] sm:$0xff]
    %v62 = vlaneseq
    %v63 = vshrl.u32 %v62, 7
    %v64 = vperm.slane %v59, 0
    %vm65 = vcmp.eq.s32.totalorder %v63, %v64
    %v66 = vsel %vm65, 1, 0
    %v67 = vcvt.s32.f32 %v66
    %vm68 = vcmask 58368
    %v69 = vsel %vm68, %v67, 0.0
    %70 = vadd.xlane.f32.xlu0 %v69
    %v71 = vpop.xlane.xlu0 %70
    %vm72 = vcmask 64512
    %v74 = vsel %vm72, %v67, 0
    %76 = vmatpush.msra.mxu0 0.0
    %77 = vmatpush.msra.mxu0 0.0
    %78 = vmatpush.msra.mxu0 0.0
    %79 = vmatpush.msra.mxu0 0.0
    %80 = vmatpush.msra.mxu0 0.0
    %81 = vmatpush.msra.mxu0 0.0
    %82 = vmatpush.msra.mxu0 0.0
    %83 = vmatpush.msra.mxu0 0.0
    %84 = vmatpush.msra.mxu0 0.0
    %85 = vmatpush.msra.mxu0 0.0
    %86 = vmatpush.msra.mxu0 0.0
    %87 = vmatpush.msra.mxu0 0.0
    %88 = vmatpush.msra.mxu0 0.0
    %89 = vmatpush.msra.mxu0 0.0
    %90 = vmatpush.msra.mxu0 0.0
    %91 = vmatpush.msra.mxu0 %v58
    %92 = vmatmul.f32.gmra.mxu0 %v74
    %v93 = vpop.f32.mrf.mxu0
    %v94 = vadd.f32 0.0, %v93
    %95 = vdwg.mxu0
    %v96 = vmax.f32 %v71, 1.0
    %v97 = vrcp.pop %v96
    %v98 = vmul.f32 %v96, %v97
    %v99 = vsub.f32 1.0, %v98
    %v100 = vmul.f32 %v97, %v99
    %v101 = vadd.f32 %v97, %v100
    %vm102 = vweird.f32 %v96
    %vm103 = vweird.f32 %v97
    %vm104 = vmor %vm102, %vm103
    %v105 = vsel %vm104, %v97, %v101
    %v106 = vand.u32 2147483647, %v96
    %vm107 = vcmp.eq.f32.partialorder %v106, 8.507059e+37
    %v108 = vand.u32 %v96, 2147483648
    %v109 = vor.u32 1.1754944e-38, %v108
    %v110 = vsel %vm107, %v109, %v105
    %v111 = vmul.f32 %v94, %v110
    %v112 = vperm.slane %v61, 6
    %vm113 = vcmask 113664
    %v115 = vsel %vm113, %v111, 0
    %vm117 = vcmask 1045504
    %v119 = vsel %vm117, %v61, 0
    %121 = vmatpush.msra.mxu0 0.0
    %122 = vmatpush.msra.mxu0 0.0
    %123 = vmatpush.msra.mxu0 0.0
    %124 = vmatpush.msra.mxu0 0.0
    %125 = vmatpush.msra.mxu0 0.0
    %126 = vmatpush.msra.mxu0 0.0
    %127 = vmatpush.msra.mxu0 0.0
    %128 = vmatpush.msra.mxu0 0.0
    %129 = vmatpush.msra.mxu0 0.0
    %130 = vmatpush.msra.mxu0 0.0
    %131 = vmatpush.msra.mxu0 0.0
    %132 = vmatpush.msra.mxu0 0.0
    %133 = vmatpush.msra.mxu0 0.0
    %134 = vmatpush.msra.mxu0 0.0
    %135 = vmatpush.msra.mxu0 %v119
    %136 = vmatpush.msra.mxu0 %v60
    %137 = vmatmul.f32.gmra.mxu0 %v115
    %v138 = vpop.f32.mrf.mxu0
    %v139 = vadd.f32 %v112, %v138
    %140 = vdwg.mxu0
    %v141 = vmax.f32 %v139, 0.0
    %143 = vrot.lane.b32.xlu0 %v60, 114
    %v144 = vpop.permute.xlu0 %143
    %145 = vrot.lane.b32.xlu0 %v61, 114
    %v146 = vpop.permute.xlu0 %145
    %149 = vrot.lane.b32.xlu0 %v112, 114
    %v150 = vpop.permute.xlu0 %149
    %v153 = vsel %vm113, %v141, 0
    %v155 = vsel %vm117, %v146, 0
    %157 = vmatpush.msra.mxu0 0.0
    %158 = vmatpush.msra.mxu0 0.0
    %159 = vmatpush.msra.mxu0 0.0
    %160 = vmatpush.msra.mxu0 0.0
    %161 = vmatpush.msra.mxu0 0.0
    %162 = vmatpush.msra.mxu0 0.0
    %163 = vmatpush.msra.mxu0 0.0
    %164 = vmatpush.msra.mxu0 0.0
    %165 = vmatpush.msra.mxu0 0.0
    %166 = vmatpush.msra.mxu0 0.0
    %167 = vmatpush.msra.mxu0 0.0
    %168 = vmatpush.msra.mxu0 0.0
    %169 = vmatpush.msra.mxu0 0.0
    %170 = vmatpush.msra.mxu0 0.0
    %171 = vmatpush.msra.mxu0 %v155
    %172 = vmatpush.msra.mxu0 %v144
    %173 = vmatmul.f32.gmra.mxu0 %v153
    %v174 = vpop.f32.mrf.mxu0
    %v175 = vadd.f32 %v150, %v174
    %176 = vdwg.mxu0
    %vm177 = vcmask 9216
    %178 = vst.msk [vmem:[#allocation8] sm:$0x3] %vm177, %v175
    // Predicated region
    $region26: #{tpu_custom_call.1} parent=1 // pred_check
      _
    $region27: #{tpu_custom_call.1} parent=1 // pred_check_branch
      %180 = sbr.rel (0) target = $region29
    $region28: #{tpu_custom_call.1} parent=1 // pred_region
      %182 = vsyncadd [#allocation4], 0
      %s184 = sshll.u32 [#allocation8], 4
      %s185 = int_to_ptr.vmem [resolvable:$true] %s184
      %s186 = sshll.u32 %s3, 4
      %s187 = int_to_ptr.hbm [resolvable:$true] %s186
      %189 = dma.vmem_to_hbm [thread:$0]  %s185, 32, %s187, [#allocation4]
    $region29: #{tpu_custom_call.1} parent=1 // pred_fallthru
      _
    // Predicated region
    $region30: #{tpu_custom_call.1} parent=1 // pred_check
      _
    $region31: #{tpu_custom_call.1} parent=1 // pred_check_branch
      %191 = sbr.rel (0) target = $region33
    $region32: #{tpu_custom_call.1} parent=1 // pred_region
      %193 = dma.done [#allocation4], 32
    $region33: #{tpu_custom_call.1} parent=1 // pred_fallthru
      _
    %194 = vsyncpa [#allocation3], 1
    %195 = vsyncpa [#allocation6], 1
    %196 = vsyncpa [#allocation4], 1

</llo_original>
